<compile_context>
chip_gen: v7x
topology: tpu7x:2x2x1
jax: 0.10.0
libtpu: 0.0.40
codegen_flags: <defaults>
</compile_context>

<pallas_src>
import functools
import math

import jax
import jax.numpy as jnp
from jax.experimental import pallas as pl
from jax.experimental.pallas import tpu as pltpu

LENGTH = 5         # module default
INIT_SIGMA = 0.5   # module default (trainable=False -> static buffer)
_VMEM_LIMIT = 64 * 1024 * 1024   # explicit VMEM budget (<= physical on v5e/v6e/v7x)


def _gaussian_weights(L, sigma):
    """Normalized L x L Gaussian as nested tuples of Python floats (static)."""
    lim = (L - 1.0) / 2.0
    g = [float(i) - lim for i in range(L)]
    k = [[math.exp(-(gh * gh + gw * gw) / (2.0 * sigma * sigma)) for gw in g]
         for gh in g]
    tot = sum(sum(row) for row in k)
    return tuple(tuple(v / tot for v in row) for row in k)


# ---------------------------------------------------------------------------
# Pass A: channel-sum reduction.  grid=(N, C), C innermost ("arbitrary").
#   x block : (1, 1, 1, H*W)  lane-dense read
#   s block : (1, 1, H*W)     output block resident across the C axis (accumulator)
# ---------------------------------------------------------------------------
def _channel_sum_kernel(x_ref, s_ref):
    @pl.when(pl.program_id(1) == 0)
    def _init():
        s_ref[...] = jnp.zeros_like(s_ref)

    # per-block f32 cast keeps vreg pressure bounded if the input is bf16 (v5e)
    s_ref[...] += x_ref[0].astype(jnp.float32)


# ---------------------------------------------------------------------------
# Pass B: 5x5 Gaussian convolution of the channel-sum plane.  grid=(N,).
#   sp block : (1, Hp, Wp)  zero-padded f32 plane (1/C of the original input traffic)
#   g  block : (1, H, W)    f32 result (tiny intermediate)
# ---------------------------------------------------------------------------
def _gauss_conv_kernel(sp_ref, g_ref, *, weights, H, W):
    L = len(weights)
    s = sp_ref[0]                                  # (Hp, Wp) f32
    # Hoist the lane-direction (dw) shifts: 5 shifted views reused across dh.
    cols = [s[:, dw:dw + W] for dw in range(L)]    # each (Hp, W)
    acc = None
    for dh in range(L):
        for dw in range(L):
            # weight is a Python float -> immediate operand of the VPU multiply
            term = weights[dh][dw] * cols[dw][dh:dh + H, :]
            acc = term if acc is None else acc + term
    g_ref[...] = acc[None]                         # (1, H, W) f32


# ---------------------------------------------------------------------------
# Pass C: broadcast to all C output channels.  grid=(N, C), fully parallel.
#   g   block : (1, 1, 1, H*W)  same block for every c (DMA elided across c)
#   out block : (1, 1, 1, H*W)  lane-dense unmasked stores (dominant HBM traffic)
# ---------------------------------------------------------------------------
def _broadcast_kernel(g_ref, o_ref):
    o_ref[...] = g_ref[...].astype(o_ref.dtype)


def smoothing_layer(x, length=LENGTH, sigma=INIT_SIGMA):
    """Pallas implementation of SmoothingLayer.forward for 4-D (NCHW) input."""
    N, C, H, W = x.shape
    L = int(length)
    # PyTorch's `padding = length / 2` is only well-defined as integer "same" padding.
    assert L % 2 == 1, "SmoothingLayer Pallas kernel assumes an odd smoothing length"
    pad = L // 2
    Hp, Wp = H + 2 * pad, W + 2 * pad
    HW = H * W

    weights = _gaussian_weights(L, float(sigma))   # static Python constants

    def cp(sem):
        return pltpu.CompilerParams(dimension_semantics=sem,
                                    vmem_limit_bytes=_VMEM_LIMIT)

    # --- pass A: channel sum (reads the full NCHW tensor exactly once) -------
    x_flat = x.reshape(N, C, 1, HW)
    s_flat = pl.pallas_call(
        _channel_sum_kernel,
        out_shape=jax.ShapeDtypeStruct((N, 1, HW), jnp.float32),
        grid=(N, C),
        in_specs=[pl.BlockSpec((1, 1, 1, HW), lambda n, c: (n, c, 0, 0))],
        out_specs=pl.BlockSpec((1, 1, HW), lambda n, c: (n, 0, 0)),
        compiler_params=cp(("parallel", "arbitrary")),
    )(x_flat)

    # --- pad only the tiny channel-summed plane (never the full NCHW tensor) -
    sp = jnp.pad(s_flat.reshape(N, H, W), ((0, 0), (pad, pad), (pad, pad)))

    # --- pass B: Gaussian smoothing of the summed plane ----------------------
    g = pl.pallas_call(
        functools.partial(_gauss_conv_kernel, weights=weights, H=H, W=W),
        out_shape=jax.ShapeDtypeStruct((N, H, W), jnp.float32),
        grid=(N,),
        in_specs=[pl.BlockSpec((1, Hp, Wp), lambda n: (n, 0, 0))],
        out_specs=pl.BlockSpec((1, H, W), lambda n: (n, 0, 0)),
        compiler_params=cp(("parallel",)),
    )(sp)

    # --- pass C: per-channel broadcast writeback (dominant traffic) ----------
    g_flat = g.reshape(N, 1, 1, HW)
    out_flat = pl.pallas_call(
        _broadcast_kernel,
        out_shape=jax.ShapeDtypeStruct((N, C, 1, HW), x.dtype),
        grid=(N, C),
        in_specs=[pl.BlockSpec((1, 1, 1, HW), lambda n, c: (n, 0, 0, 0))],
        out_specs=pl.BlockSpec((1, 1, 1, HW), lambda n, c: (n, c, 0, 0)),
        compiler_params=cp(("parallel", "parallel")),
    )(g_flat)

    return out_flat.reshape(N, C, H, W)

# TODO(synk): only the 2-D (NCHW) branch of the N-D module is implemented; the 1-D/3-D
# branches and a traced (trainable) sigma would need an SMEM-weight variant.


def _reference(x, length=LENGTH, sigma=INIT_SIGMA):
    """Plain-JAX reference matching the PyTorch module exactly."""
    N, C, H, W = x.shape
    L = int(length)
    lim = (L - 1.0) / 2.0
    gg = jnp.arange(L, dtype=jnp.float32) - lim
    g2 = gg[:, None] ** 2 + gg[None, :] ** 2
    k = jnp.exp(-g2 / (2.0 * jnp.float32(sigma) ** 2))
    k = k / jnp.sum(k)
    final_kernel = jnp.broadcast_to(k[None, None], (C, C, L, L))  # OIHW
    pad = L // 2
    return jax.lax.conv_general_dilated(
        x, final_kernel, window_strides=(1, 1),
        padding=[(pad, pad), (pad, pad)],
        dimension_numbers=("NCHW", "OIHW", "NCHW"))


if __name__ == "__main__":
    key = jax.random.PRNGKey(0)
    x = jax.random.normal(key, (2, 4, 16, 16), dtype=jnp.float32)

    y = jax.block_until_ready(jax.jit(smoothing_layer)(x))
    y_ref = jax.block_until_ready(_reference(x))

    assert y.shape == y_ref.shape == (2, 4, 16, 16)
    assert jnp.allclose(y, y_ref, atol=1e-5, rtol=1e-5), "mismatch vs reference"
    print("KERNEL_OK")
</pallas_src>

<mosaic_0001>
module attributes {stable_mosaic.version = 11 : i64} {
  func.func @_channel_sum_kernel(%arg0: i32, %arg1: i32, %arg2: memref<1x1x1x256xf32, #tpu.memory_space<vmem>>, %arg3: memref<1x1x256xf32, #tpu.memory_space<vmem>>) attributes {dimension_semantics = [#tpu.dimension_semantics<parallel>, #tpu.dimension_semantics<arbitrary>], iteration_bounds = array<i64: 2, 4>, scalar_prefetch = 0 : i64, scratch_operands = 0 : i64, tpu.core_type = #tpu.core_type<tc>, window_params = [{transform_indices = @transform_0, window_bounds = array<i64: 1, 1, 1, 256>}, {transform_indices = @transform_1, window_bounds = array<i64: 1, 1, 256>}]} {
    %c0_i32 = arith.constant 0 : i32
    %0 = arith.cmpi eq, %arg1, %c0_i32 : i32
    %1 = arith.extui %0 : i1 to i32
    %c0_i32_0 = arith.constant 0 : i32
    %2 = arith.cmpi ne, %1, %c0_i32_0 : i32
    scf.if %2 {
      %cst = arith.constant 0.000000e+00 : f32
      %8 = vector.broadcast %cst : f32 to vector<1x1x256xf32>
      %c0_10 = arith.constant 0 : index
      %c0_11 = arith.constant 0 : index
      %c0_12 = arith.constant 0 : index
      %9 = vector.load %arg3[%c0_10, %c0_11, %c0_12] : memref<1x1x256xf32, #tpu.memory_space<vmem>>, vector<1x1x256xf32>
      tpu.vector_store %arg3[%c0_10, %c0_11, %c0_12], %8 {strides = array<i32>} : memref<1x1x256xf32, #tpu.memory_space<vmem>>, vector<1x1x256xf32>,
    } else {
    }
    %c0 = arith.constant 0 : index
    %c0_1 = arith.constant 0 : index
    %c0_2 = arith.constant 0 : index
    %3 = vector.load %arg3[%c0, %c0_1, %c0_2] : memref<1x1x256xf32, #tpu.memory_space<vmem>>, vector<1x1x256xf32>
    %c0_3 = arith.constant 0 : index
    %c0_4 = arith.constant 0 : index
    %c0_5 = arith.constant 0 : index
    %c0_6 = arith.constant 0 : index
    %4 = vector.load %arg2[%c0_3, %c0_4, %c0_5, %c0_6] : memref<1x1x1x256xf32, #tpu.memory_space<vmem>>, vector<1x1x1x256xf32>
    %5 = vector.shape_cast %4 : vector<1x1x1x256xf32> to vector<1x1x256xf32>
    %6 = arith.addf %3, %5 : vector<1x1x256xf32>
    %c0_7 = arith.constant 0 : index
    %c0_8 = arith.constant 0 : index
    %c0_9 = arith.constant 0 : index
    %7 = vector.load %arg3[%c0_7, %c0_8, %c0_9] : memref<1x1x256xf32, #tpu.memory_space<vmem>>, vector<1x1x256xf32>
    tpu.vector_store %arg3[%c0_7, %c0_8, %c0_9], %6 {strides = array<i32>} : memref<1x1x256xf32, #tpu.memory_space<vmem>>, vector<1x1x256xf32>,
    return
  }
  func.func @transform_0(%arg0: i32, %arg1: i32) -> (i32, i32, i32, i32) {
    %c0_i32 = arith.constant 0 : i32
    %c0_i32_0 = arith.constant 0 : i32
    %c0_i32_1 = arith.constant 0 : i32
    return %arg0, %arg1, %c0_i32, %c0_i32_0 : i32, i32, i32, i32
  }
  func.func @transform_1(%arg0: i32, %arg1: i32) -> (i32, i32, i32) {
    %c0_i32 = arith.constant 0 : i32
    %c0_i32_0 = arith.constant 0 : i32
    %c0_i32_1 = arith.constant 0 : i32
    return %arg0, %c0_i32, %c0_i32_0 : i32, i32, i32
  }
}

module attributes {stable_mosaic.version = 11 : i64} {
  func.func @_broadcast_kernel(%arg0: i32, %arg1: i32, %arg2: memref<1x1x1x256xf32, #tpu.memory_space<vmem>>, %arg3: memref<1x1x1x256xf32, #tpu.memory_space<vmem>>) attributes {dimension_semantics = [#tpu.dimension_semantics<parallel>, #tpu.dimension_semantics<parallel>], iteration_bounds = array<i64: 2, 4>, scalar_prefetch = 0 : i64, scratch_operands = 0 : i64, tpu.core_type = #tpu.core_type<tc>, window_params = [{transform_indices = @transform_0, window_bounds = array<i64: 1, 1, 1, 256>}, {transform_indices = @transform_1, window_bounds = array<i64: 1, 1, 1, 256>}]} {
    %c0 = arith.constant 0 : index
    %c0_0 = arith.constant 0 : index
    %c0_1 = arith.constant 0 : index
    %c0_2 = arith.constant 0 : index
    %0 = vector.load %arg2[%c0, %c0_0, %c0_1, %c0_2] : memref<1x1x1x256xf32, #tpu.memory_space<vmem>>, vector<1x1x1x256xf32>
    %c0_3 = arith.constant 0 : index
    %c0_4 = arith.constant 0 : index
    %c0_5 = arith.constant 0 : index
    %c0_6 = arith.constant 0 : index
    %1 = vector.load %arg3[%c0_3, %c0_4, %c0_5, %c0_6] : memref<1x1x1x256xf32, #tpu.memory_space<vmem>>, vector<1x1x1x256xf32>
    tpu.vector_store %arg3[%c0_3, %c0_4, %c0_5, %c0_6], %0 {strides = array<i32>} : memref<1x1x1x256xf32, #tpu.memory_space<vmem>>, vector<1x1x1x256xf32>,
    return
  }
  func.func @transform_0(%arg0: i32, %arg1: i32) -> (i32, i32, i32, i32) {
    %c0_i32 = arith.constant 0 : i32
    %c0_i32_0 = arith.constant 0 : i32
    %c0_i32_1 = arith.constant 0 : i32
    %c0_i32_2 = arith.constant 0 : i32
    return %arg0, %c0_i32, %c0_i32_0, %c0_i32_1 : i32, i32, i32, i32
  }
  func.func @transform_1(%arg0: i32, %arg1: i32) -> (i32, i32, i32, i32) {
    %c0_i32 = arith.constant 0 : i32
    %c0_i32_0 = arith.constant 0 : i32
    %c0_i32_1 = arith.constant 0 : i32
    return %arg0, %arg1, %c0_i32, %c0_i32_0 : i32, i32, i32, i32
  }
}

module attributes {stable_mosaic.version = 11 : i64} {
  func.func @_gauss_conv_kernel(%arg0: i32, %arg1: memref<1x20x20xf32, #tpu.memory_space<vmem>>, %arg2: memref<1x16x16xf32, #tpu.memory_space<vmem>>) attributes {dimension_semantics = [#tpu.dimension_semantics<parallel>], iteration_bounds = array<i64: 2>, scalar_prefetch = 0 : i64, scratch_operands = 0 : i64, tpu.core_type = #tpu.core_type<tc>, window_params = [{transform_indices = @transform_0, window_bounds = array<i64: 1, 20, 20>}, {transform_indices = @transform_1, window_bounds = array<i64: 1, 16, 16>}]} {
    %c0 = arith.constant 0 : index
    %c0_0 = arith.constant 0 : index
    %c0_1 = arith.constant 0 : index
    %0 = vector.load %arg1[%c0, %c0_0, %c0_1] : memref<1x20x20xf32, #tpu.memory_space<vmem>>, vector<1x20x20xf32>
    %1 = vector.shape_cast %0 : vector<1x20x20xf32> to vector<20x20xf32>
    %2 = vector.extract_strided_slice %1 {offsets = [0, 0], sizes = [20, 16], strides = [1, 1]} : vector<20x20xf32> to vector<20x16xf32>
    %3 = vector.extract_strided_slice %1 {offsets = [0, 1], sizes = [20, 16], strides = [1, 1]} : vector<20x20xf32> to vector<20x16xf32>
    %4 = vector.extract_strided_slice %1 {offsets = [0, 2], sizes = [20, 16], strides = [1, 1]} : vector<20x20xf32> to vector<20x16xf32>
    %5 = vector.extract_strided_slice %1 {offsets = [0, 3], sizes = [20, 16], strides = [1, 1]} : vector<20x20xf32> to vector<20x16xf32>
    %6 = vector.extract_strided_slice %1 {offsets = [0, 4], sizes = [20, 16], strides = [1, 1]} : vector<20x20xf32> to vector<20x16xf32>
    %7 = vector.extract_strided_slice %2 {offsets = [0, 0], sizes = [16, 16], strides = [1, 1]} : vector<20x16xf32> to vector<16x16xf32>
    %cst = arith.constant 6.96247823E-8 : f32
    %8 = vector.broadcast %cst : f32 to vector<16x16xf32>
    %9 = arith.mulf %8, %7 : vector<16x16xf32>
    %10 = vector.extract_strided_slice %3 {offsets = [0, 0], sizes = [16, 16], strides = [1, 1]} : vector<20x16xf32> to vector<16x16xf32>
    %cst_2 = arith.constant 2.80886416E-5 : f32
    %11 = vector.broadcast %cst_2 : f32 to vector<16x16xf32>
    %12 = arith.mulf %11, %10 : vector<16x16xf32>
    %13 = arith.addf %9, %12 : vector<16x16xf32>
    %14 = vector.extract_strided_slice %4 {offsets = [0, 0], sizes = [16, 16], strides = [1, 1]} : vector<20x16xf32> to vector<16x16xf32>
    %cst_3 = arith.constant 2.07548554E-4 : f32
    %15 = vector.broadcast %cst_3 : f32 to vector<16x16xf32>
    %16 = arith.mulf %15, %14 : vector<16x16xf32>
    %17 = arith.addf %13, %16 : vector<16x16xf32>
    %18 = vector.extract_strided_slice %5 {offsets = [0, 0], sizes = [16, 16], strides = [1, 1]} : vector<20x16xf32> to vector<16x16xf32>
    %cst_4 = arith.constant 2.80886416E-5 : f32
    %19 = vector.broadcast %cst_4 : f32 to vector<16x16xf32>
    %20 = arith.mulf %19, %18 : vector<16x16xf32>
    %21 = arith.addf %17, %20 : vector<16x16xf32>
    %22 = vector.extract_strided_slice %6 {offsets = [0, 0], sizes = [16, 16], strides = [1, 1]} : vector<20x16xf32> to vector<16x16xf32>
    %cst_5 = arith.constant 6.96247823E-8 : f32
    %23 = vector.broadcast %cst_5 : f32 to vector<16x16xf32>
    %24 = arith.mulf %23, %22 : vector<16x16xf32>
    %25 = arith.addf %21, %24 : vector<16x16xf32>
    %26 = vector.extract_strided_slice %2 {offsets = [1, 0], sizes = [16, 16], strides = [1, 1]} : vector<20x16xf32> to vector<16x16xf32>
    %cst_6 = arith.constant 2.80886416E-5 : f32
    %27 = vector.broadcast %cst_6 : f32 to vector<16x16xf32>
    %28 = arith.mulf %27, %26 : vector<16x16xf32>
    %29 = arith.addf %25, %28 : vector<16x16xf32>
    %30 = vector.extract_strided_slice %3 {offsets = [1, 0], sizes = [16, 16], strides = [1, 1]} : vector<20x16xf32> to vector<16x16xf32>
    %cst_7 = arith.constant 0.0113317668 : f32
    %31 = vector.broadcast %cst_7 : f32 to vector<16x16xf32>
    %32 = arith.mulf %31, %30 : vector<16x16xf32>
    %33 = arith.addf %29, %32 : vector<16x16xf32>
    %34 = vector.extract_strided_slice %4 {offsets = [1, 0], sizes = [16, 16], strides = [1, 1]} : vector<20x16xf32> to vector<16x16xf32>
    %cst_8 = arith.constant 0.0837310627 : f32
    %35 = vector.broadcast %cst_8 : f32 to vector<16x16xf32>
    %36 = arith.mulf %35, %34 : vector<16x16xf32>
    %37 = arith.addf %33, %36 : vector<16x16xf32>
    %38 = vector.extract_strided_slice %5 {offsets = [1, 0], sizes = [16, 16], strides = [1, 1]} : vector<20x16xf32> to vector<16x16xf32>
    %cst_9 = arith.constant 0.0113317668 : f32
    %39 = vector.broadcast %cst_9 : f32 to vector<16x16xf32>
    %40 = arith.mulf %39, %38 : vector<16x16xf32>
    %41 = arith.addf %37, %40 : vector<16x16xf32>
    %42 = vector.extract_strided_slice %6 {offsets = [1, 0], sizes = [16, 16], strides = [1, 1]} : vector<20x16xf32> to vector<16x16xf32>
    %cst_10 = arith.constant 2.80886416E-5 : f32
    %43 = vector.broadcast %cst_10 : f32 to vector<16x16xf32>
    %44 = arith.mulf %43, %42 : vector<16x16xf32>
    %45 = arith.addf %41, %44 : vector<16x16xf32>
    %46 = vector.extract_strided_slice %2 {offsets = [2, 0], sizes = [16, 16], strides = [1, 1]} : vector<20x16xf32> to vector<16x16xf32>
    %cst_11 = arith.constant 2.07548554E-4 : f32
    %47 = vector.broadcast %cst_11 : f32 to vector<16x16xf32>
    %48 = arith.mulf %47, %46 : vector<16x16xf32>
    %49 = arith.addf %45, %48 : vector<16x16xf32>
    %50 = vector.extract_strided_slice %3 {offsets = [2, 0], sizes = [16, 16], strides = [1, 1]} : vector<20x16xf32> to vector<16x16xf32>
    %cst_12 = arith.constant 0.0837310627 : f32
    %51 = vector.broadcast %cst_12 : f32 to vector<16x16xf32>
    %52 = arith.mulf %51, %50 : vector<16x16xf32>
    %53 = arith.addf %49, %52 : vector<16x16xf32>
    %54 = vector.extract_strided_slice %4 {offsets = [2, 0], sizes = [16, 16], strides = [1, 1]} : vector<20x16xf32> to vector<16x16xf32>
    %cst_13 = arith.constant 0.61869353 : f32
    %55 = vector.broadcast %cst_13 : f32 to vector<16x16xf32>
    %56 = arith.mulf %55, %54 : vector<16x16xf32>
    %57 = arith.addf %53, %56 : vector<16x16xf32>
    %58 = vector.extract_strided_slice %5 {offsets = [2, 0], sizes = [16, 16], strides = [1, 1]} : vector<20x16xf32> to vector<16x16xf32>
    %cst_14 = arith.constant 0.0837310627 : f32
    %59 = vector.broadcast %cst_14 : f32 to vector<16x16xf32>
    %60 = arith.mulf %59, %58 : vector<16x16xf32>
    %61 = arith.addf %57, %60 : vector<16x16xf32>
    %62 = vector.extract_strided_slice %6 {offsets = [2, 0], sizes = [16, 16], strides = [1, 1]} : vector<20x16xf32> to vector<16x16xf32>
    %cst_15 = arith.constant 2.07548554E-4 : f32
    %63 = vector.broadcast %cst_15 : f32 to vector<16x16xf32>
    %64 = arith.mulf %63, %62 : vector<16x16xf32>
    %65 = arith.addf %61, %64 : vector<16x16xf32>
    %66 = vector.extract_strided_slice %2 {offsets = [3, 0], sizes = [16, 16], strides = [1, 1]} : vector<20x16xf32> to vector<16x16xf32>
    %cst_16 = arith.constant 2.80886416E-5 : f32
    %67 = vector.broadcast %cst_16 : f32 to vector<16x16xf32>
    %68 = arith.mulf %67, %66 : vector<16x16xf32>
    %69 = arith.addf %65, %68 : vector<16x16xf32>
    %70 = vector.extract_strided_slice %3 {offsets = [3, 0], sizes = [16, 16], strides = [1, 1]} : vector<20x16xf32> to vector<16x16xf32>
    %cst_17 = arith.constant 0.0113317668 : f32
    %71 = vector.broadcast %cst_17 : f32 to vector<16x16xf32>
    %72 = arith.mulf %71, %70 : vector<16x16xf32>
    %73 = arith.addf %69, %72 : vector<16x16xf32>
    %74 = vector.extract_strided_slice %4 {offsets = [3, 0], sizes = [16, 16], strides = [1, 1]} : vector<20x16xf32> to vector<16x16xf32>
    %cst_18 = arith.constant 0.0837310627 : f32
    %75 = vector.broadcast %cst_18 : f32 to vector<16x16xf32>
    %76 = arith.mulf %75, %74 : vector<16x16xf32>
    %77 = arith.addf %73, %76 : vector<16x16xf32>
    %78 = vector.extract_strided_slice %5 {offsets = [3, 0], sizes = [16, 16], strides = [1, 1]} : vector<20x16xf32> to vector<16x16xf32>
    %cst_19 = arith.constant 0.0113317668 : f32
    %79 = vector.broadcast %cst_19 : f32 to vector<16x16xf32>
    %80 = arith.mulf %79, %78 : vector<16x16xf32>
    %81 = arith.addf %77, %80 : vector<16x16xf32>
    %82 = vector.extract_strided_slice %6 {offsets = [3, 0], sizes = [16, 16], strides = [1, 1]} : vector<20x16xf32> to vector<16x16xf32>
    %cst_20 = arith.constant 2.80886416E-5 : f32
    %83 = vector.broadcast %cst_20 : f32 to vector<16x16xf32>
    %84 = arith.mulf %83, %82 : vector<16x16xf32>
    %85 = arith.addf %81, %84 : vector<16x16xf32>
    %86 = vector.extract_strided_slice %2 {offsets = [4, 0], sizes = [16, 16], strides = [1, 1]} : vector<20x16xf32> to vector<16x16xf32>
    %cst_21 = arith.constant 6.96247823E-8 : f32
    %87 = vector.broadcast %cst_21 : f32 to vector<16x16xf32>
    %88 = arith.mulf %87, %86 : vector<16x16xf32>
    %89 = arith.addf %85, %88 : vector<16x16xf32>
    %90 = vector.extract_strided_slice %3 {offsets = [4, 0], sizes = [16, 16], strides = [1, 1]} : vector<20x16xf32> to vector<16x16xf32>
    %cst_22 = arith.constant 2.80886416E-5 : f32
    %91 = vector.broadcast %cst_22 : f32 to vector<16x16xf32>
    %92 = arith.mulf %91, %90 : vector<16x16xf32>
    %93 = arith.addf %89, %92 : vector<16x16xf32>
    %94 = vector.extract_strided_slice %4 {offsets = [4, 0], sizes = [16, 16], strides = [1, 1]} : vector<20x16xf32> to vector<16x16xf32>
    %cst_23 = arith.constant 2.07548554E-4 : f32
    %95 = vector.broadcast %cst_23 : f32 to vector<16x16xf32>
    %96 = arith.mulf %95, %94 : vector<16x16xf32>
    %97 = arith.addf %93, %96 : vector<16x16xf32>
    %98 = vector.extract_strided_slice %5 {offsets = [4, 0], sizes = [16, 16], strides = [1, 1]} : vector<20x16xf32> to vector<16x16xf32>
    %cst_24 = arith.constant 2.80886416E-5 : f32
    %99 = vector.broadcast %cst_24 : f32 to vector<16x16xf32>
    %100 = arith.mulf %99, %98 : vector<16x16xf32>
    %101 = arith.addf %97, %100 : vector<16x16xf32>
    %102 = vector.extract_strided_slice %6 {offsets = [4, 0], sizes = [16, 16], strides = [1, 1]} : vector<20x16xf32> to vector<16x16xf32>
    %cst_25 = arith.constant 6.96247823E-8 : f32
    %103 = vector.broadcast %cst_25 : f32 to vector<16x16xf32>
    %104 = arith.mulf %103, %102 : vector<16x16xf32>
    %105 = arith.addf %101, %104 : vector<16x16xf32>
    %106 = vector.shape_cast %105 : vector<16x16xf32> to vector<1x16x16xf32>
    %c0_26 = arith.constant 0 : index
    %c0_27 = arith.constant 0 : index
    %c0_28 = arith.constant 0 : index
    %107 = vector.load %arg2[%c0_26, %c0_27, %c0_28] : memref<1x16x16xf32, #tpu.memory_space<vmem>>, vector<1x16x16xf32>
    tpu.vector_store %arg2[%c0_26, %c0_27, %c0_28], %106 {strides = array<i32>} : memref<1x16x16xf32, #tpu.memory_space<vmem>>, vector<1x16x16xf32>,
    return
  }
  func.func @transform_0(%arg0: i32) -> (i32, i32, i32) {
    %c0_i32 = arith.constant 0 : i32
    %c0_i32_0 = arith.constant 0 : i32
    %c0_i32_1 = arith.constant 0 : i32
    return %arg0, %c0_i32, %c0_i32_0 : i32, i32, i32
  }
  func.func @transform_1(%arg0: i32) -> (i32, i32, i32) {
    %c0_i32 = arith.constant 0 : i32
    %c0_i32_0 = arith.constant 0 : i32
    %c0_i32_1 = arith.constant 0 : i32
    return %arg0, %c0_i32, %c0_i32_0 : i32, i32, i32
  }
}

</mosaic_0001>

<llo_original>
// kernel: smoothing_layer.3
$region0: #{smoothing_layer.3}
  #allocation0 [shape = 'u32[]', space=smem, size = 0x4, offset = 0x4, fixed_abs, tag = 'smem constant byte address 0x4 - core index']
  #allocation1 [shape = 'u32[144,128]{1,0:T(1,128)}', space=vmem, size = 0x12000, scoped, tag = 'internal scratch']
  %s0 = inlined_call_operand.hbm [shape: f32[2,4,1,256], index: 0, kind: input, shape index: {}]
  %s1 = inlined_call_operand.hbm [shape: f32[2,1,256], index: 1, kind: output, shape index: {}]
  %s2 = sld [smem:[#allocation0]]
  $region45: #{smoothing_layer.3} parent=0
    _
  %s4 = ssub.s32 1, %s2
  %s5 = scalar_select 0, %s4, %s2
  $region1: #{smoothing_layer.3} parent=0
    #allocation2 [shape = 'u8[2048]{0}', space=vmem, size = 0x800, scoped, tag = 'input window, operand 0']
    #allocation3 [shape = 's32[2]{0}', space=sflag, size = 0x8, scoped, tag = 'scoped memory for smoothing_layer.3']
    #allocation4 [shape = 's32[2]{0}', space=sflag, size = 0x8, scoped, tag = 'scoped memory for smoothing_layer.3']
    #allocation5 [shape = 'u8[2048]{0}', space=vmem, size = 0x800, scoped, tag = 'output window, operand 0']
    %6 = vsyncpa [#allocation3], 0
    %s7 = scalar_lea.sflag [#allocation3], 1
    %8 = vsyncpa %s7, 0
    %9 = vsyncpa [#allocation4], 0
    %s10 = scalar_lea.sflag [#allocation4], 1
    %11 = vsyncpa %s10, 0
    loop: start=0, step=1, limit=10
    $region2: #{smoothing_layer.3} parent=1 // loop_pre_header
      _
    $region3: #{smoothing_layer.3} parent=1 // loop_header
      %s13 = sphi 0, %s17
      %p14 = scmp.ge.s32.totalorder %s13, 10
      %s20 = sphi 0, %s32
      %s21 = sphi 0, %s28
      %s22 = sphi 0, %s20
      %s23 = sphi 0, %s21
      %s24 = sphi 0, %s22
      %s25 = sphi 0, %s23
      %s37 = sphi 0, %s39
      %s40 = sphi 0, %s37
      %s41 = sphi 0, %s40
      %s57 = sphi 0, %s41
      %s63 = sphi 0, %s65
      %s66 = sphi 0, %s63
      %s67 = sphi 0, %s66
      %s83 = sphi 0, %s67
    $region4: #{smoothing_layer.3} parent=1 // loop_header_branch
      %16 = sbr.rel (%p14) target = $region8
    $region5: #{smoothing_layer.3} parent=1 // loop_body
      %s18 = ssub.s32 %s13, 1
      %s19 = ssub.s32 %s13, 2
      %s26 = sadd.s32 1, %s21
      %p27 = scmp.ge.s32.totalorder %s26, 4
      %s28 = scalar_select %p27, 0, %s26
      %s29 = sadd.s32 1, %s20
      %s30 = scalar_select %p27, %s29, %s20
      %p31 = scmp.ge.s32.totalorder %s30, 2
      %s32 = scalar_select %p31, 0, %s30
      %s33 = ssub.s32 %s20, %s32
      %s34 = ssub.s32 %s21, %s28
      %s35 = sor.u32 %s33, %s34
      %p36 = scmp.eq.s32.totalorder %s35, 0
      %s38 = sadd.s32 %s37, 1
      %s39 = scalar_select %p36, %s37, %s38
      %p42 = pneg %p36
      %p43 = scmp.eq.s32.totalorder %s13, 7
      %p44 = por %p42, %p43
      %p45 = scmp.ne.s32.totalorder %s37, %s40
      %p46 = scmp.eq.s32.totalorder %s13, 0
      %p47 = por %p45, %p46
      %p48 = scmp.ne.s32.totalorder %s37, %s40
      %p49 = scmp.eq.s32.totalorder %s18, 7
      %p50 = por %p48, %p49
      %p51 = scmp.ne.s32.totalorder %s40, %s41
      %p52 = scmp.eq.s32.totalorder %s18, 0
      %p53 = por %p51, %p52
      %p54 = scmp.ne.s32.totalorder %s40, %s41
      %p55 = scmp.eq.s32.totalorder %s19, 7
      %p56 = por %p54, %p55
      %p58 = scmp.ne.s32.totalorder %s41, %s57
      %p59 = scmp.eq.s32.totalorder %s19, 0
      %p60 = por %p58, %p59
      %s61 = ssub.s32 %s20, %s32
      %p62 = scmp.eq.s32.totalorder %s61, 0
      %s64 = sadd.s32 %s63, 1
      %s65 = scalar_select %p62, %s63, %s64
      %p68 = pneg %p62
      %p69 = scmp.eq.s32.totalorder %s13, 7
      %p70 = por %p68, %p69
      %p71 = scmp.ne.s32.totalorder %s63, %s66
      %p72 = scmp.eq.s32.totalorder %s13, 0
      %p73 = por %p71, %p72
      %p74 = scmp.ne.s32.totalorder %s63, %s66
      %p75 = scmp.eq.s32.totalorder %s18, 7
      %p76 = por %p74, %p75
      %p77 = scmp.ne.s32.totalorder %s66, %s67
      %p78 = scmp.eq.s32.totalorder %s18, 0
      %p79 = por %p77, %p78
      %p80 = scmp.ne.s32.totalorder %s66, %s67
      %p81 = scmp.eq.s32.totalorder %s19, 7
      %p82 = por %p80, %p81
      %p84 = scmp.ne.s32.totalorder %s67, %s83
      %p85 = scmp.eq.s32.totalorder %s19, 0
      %p86 = por %p84, %p85
      %p87 = scmp.le.s32.totalorder 1, %s13
      %p88 = scmp.lt.s32.totalorder %s13, 9
      %p89 = pnand %p87, %p88
      %p90 = pneg %p89
      // Predicated region
      $region9: #{smoothing_layer.3} parent=5 // pred_check
        _
      $region10: #{smoothing_layer.3} parent=5 // pred_check_branch
        %92 = sbr.rel (%p89) target = $region12
      $region11: #{smoothing_layer.3} parent=5 // pred_region
        %s93 = ssub.s32 %s13, 1
      $region12: #{smoothing_layer.3} parent=5 // pred_fallthru
        _
      %p94 = scmp.lt.s32.totalorder %s13, 8
      // Predicated region
      $region13: #{smoothing_layer.3} parent=5 // pred_check
        %p95 = pneg %p94
      $region14: #{smoothing_layer.3} parent=5 // pred_check_branch
        %97 = sbr.rel (%p95) target = $region16
      $region15: #{smoothing_layer.3} parent=5 // pred_region
        // Predicated region
        $region17: #{smoothing_layer.3} parent=15 // pred_check
          %p98 = pneg %p47
        $region18: #{smoothing_layer.3} parent=15 // pred_check_branch
          %100 = sbr.rel (%p98) target = $region20
        $region19: #{smoothing_layer.3} parent=15 // pred_region
          %s101 = sand.u32 %s37, 1
          %s102 = scalar_lea.sflag [#allocation3], %s101
          %s103 = sand.u32 %s37, 1
          %s104 = smul.addr %s103, 2
          %s105 = scalar_lea.vmem [#allocation2], %s104
          %s107 = ssub.s32 32, 32
          %108 = vsyncadd %s102, %s107
          %s109 = smul.addr %s21, 2
          %s110 = smul.addr %s20, 8
          %s111 = sadd.s32 %s109, %s110
          %s112 = smul.addr %s111, 16
          %s113 = scalar_lea.hbm %s0, %s112
          %s115 = sshll.u32 %s105, 4
          %s116 = int_to_ptr.vmem [resolvable:$true] %s115
          %118 = dma.hbm_to_vmem [thread:$0]  %s113, 32, %s116, %s102
        $region20: #{smoothing_layer.3} parent=15 // pred_fallthru
          _
      $region16: #{smoothing_layer.3} parent=5 // pred_fallthru
        _
      %p119 = scmp.le.s32.totalorder 1, %s13
      %p120 = scmp.lt.s32.totalorder %s13, 9
      %p121 = pnand %p119, %p120
      %p122 = pneg %p121
      // Predicated region
      $region21: #{smoothing_layer.3} parent=5 // pred_check
        _
      $region22: #{smoothing_layer.3} parent=5 // pred_check_branch
        %124 = sbr.rel (%p121) target = $region24
      $region23: #{smoothing_layer.3} parent=5 // pred_region
        %s125 = ssub.s32 %s13, 1
        %s126 = sand.u32 %s40, 1
        %s127 = scalar_lea.sflag [#allocation3], %s126
        %s128 = sand.u32 %s40, 1
        %s129 = smul.addr %s128, 2
        %s130 = scalar_lea.vmem [#allocation2], %s129
        // Predicated region
        $region25: #{smoothing_layer.3} parent=23 // pred_check
          %p131 = pneg %p53
        $region26: #{smoothing_layer.3} parent=23 // pred_check_branch
          %133 = sbr.rel (%p131) target = $region28
        $region27: #{smoothing_layer.3} parent=23 // pred_region
          %134 = dma.done %s127, 32
        $region28: #{smoothing_layer.3} parent=23 // pred_fallthru
          _
        %s135 = sand.u32 %s40, 1
        %s136 = scalar_lea.sflag [#allocation3], %s135
        %s137 = sand.u32 %s40, 1
        %s138 = smul.addr %s137, 2
        %s139 = scalar_lea.vmem [#allocation2], %s138
        %p140 = pneg %p53
        %p141 = pneg %p50
        %p142 = pneg %p79
        %p143 = pneg %p76
        %s144 = sand.u32 %s66, 1
        %s145 = scalar_lea.sflag [#allocation4], %s144
        %s146 = sand.u32 %s66, 1
        %s147 = smul.addr %s146, 2
        %s148 = scalar_lea.vmem [#allocation5], %s147
        %p149 = scmp.eq.s32.totalorder %s23, 0
        // Predicated region
        $region29: #{smoothing_layer.3} parent=23 // pred_check
          %p150 = pneg %p149
        $region30: #{smoothing_layer.3} parent=23 // pred_check_branch
          %152 = sbr.rel (%p150) target = $region32
        $region31: #{smoothing_layer.3} parent=23 // pred_region
          %v153 = vlaneseq
          %vm154 = vcmp.ge.s32.totalorder %v153, 0
          %vm155 = vcmp.lt.s32.totalorder %v153, 256
          %vm156 = vmand %vm154, %vm155
          %157 = vst.msk [vmem:[%s148] sm:$0x3] %vm156, 0.0
        $region32: #{smoothing_layer.3} parent=23 // pred_fallthru
          _
        %v158 = vld [vmem:[%s148] sm:$0x3]
        %v159 = vld [vmem:[%s130] sm:$0x3]
        %v160 = vadd.f32 %v158, %v159
        %v161 = vlaneseq
        %vm162 = vcmp.ge.s32.totalorder %v161, 0
        %vm163 = vcmp.lt.s32.totalorder %v161, 256
        %vm164 = vmand %vm162, %vm163
        %165 = vst.msk [vmem:[%s148] sm:$0x3] %vm164, %v160
        %s166 = sand.u32 %s66, 1
        %s167 = scalar_lea.sflag [#allocation4], %s166
        %s168 = sand.u32 %s66, 1
        %s169 = smul.addr %s168, 2
        %s170 = scalar_lea.vmem [#allocation5], %s169
        // Predicated region
        $region33: #{smoothing_layer.3} parent=23 // pred_check
          %p171 = pneg %p76
        $region34: #{smoothing_layer.3} parent=23 // pred_check_branch
          %173 = sbr.rel (%p171) target = $region36
        $region35: #{smoothing_layer.3} parent=23 // pred_region
          %s175 = ssub.s32 32, 32
          %176 = vsyncadd %s167, %s175
          %s177 = smul.addr %s22, 2
          %s178 = smul.addr %s177, 16
          %s179 = scalar_lea.hbm %s1, %s178
          %s181 = sshll.u32 %s170, 4
          %s182 = int_to_ptr.vmem [resolvable:$true] %s181
          %184 = dma.vmem_to_hbm [thread:$0]  %s182, 32, %s179, %s167
        $region36: #{smoothing_layer.3} parent=23 // pred_fallthru
          _
      $region24: #{smoothing_layer.3} parent=5 // pred_fallthru
        _
      %p185 = scmp.le.s32.totalorder 2, %s13
      // Predicated region
      $region37: #{smoothing_layer.3} parent=5 // pred_check
        %p186 = pneg %p185
      $region38: #{smoothing_layer.3} parent=5 // pred_check_branch
        %188 = sbr.rel (%p186) target = $region40
      $region39: #{smoothing_layer.3} parent=5 // pred_region
        %s189 = ssub.s32 %s13, 2
        // Predicated region
        $region41: #{smoothing_layer.3} parent=39 // pred_check
          %p190 = pneg %p82
        $region42: #{smoothing_layer.3} parent=39 // pred_check_branch
          %192 = sbr.rel (%p190) target = $region44
        $region43: #{smoothing_layer.3} parent=39 // pred_region
          %s193 = sand.u32 %s67, 1
          %s194 = scalar_lea.sflag [#allocation4], %s193
          %s195 = sand.u32 %s67, 1
          %s196 = smul.addr %s195, 2
          %s197 = scalar_lea.vmem [#allocation5], %s196
          %198 = dma.done %s194, 32
        $region44: #{smoothing_layer.3} parent=39 // pred_fallthru
          _
      $region40: #{smoothing_layer.3} parent=5 // pred_fallthru
        _
    $region6: #{smoothing_layer.3} parent=1 // loop_footer
      %s17 = sadd.s32 1, %s13
    $region7: #{smoothing_layer.3} parent=1 // loop_footer_branch
      %12 = sbr.rel target = $region3
    $region8: #{smoothing_layer.3} parent=1 // loop_exit
      _
    %199 = vsyncpa [#allocation3], 1
    %s200 = scalar_lea.sflag [#allocation3], 1
    %201 = vsyncpa %s200, 1
    %202 = vsyncpa [#allocation4], 1
    %s203 = scalar_lea.sflag [#allocation4], 1
    %204 = vsyncpa %s203, 1

// kernel: smoothing_layer.5
$region0: #{smoothing_layer.5}
  #allocation0 [shape = 'u32[]', space=smem, size = 0x4, offset = 0x4, fixed_abs, tag = 'smem constant byte address 0x4 - core index']
  #allocation1 [shape = 'u32[144,128]{1,0:T(1,128)}', space=vmem, size = 0x12000, scoped, tag = 'internal scratch']
  %s0 = inlined_call_operand.hbm [shape: f32[2,1,1,256], index: 0, kind: input, shape index: {}]
  %s1 = inlined_call_operand.hbm [shape: f32[2,4,1,256], index: 1, kind: output, shape index: {}]
  %s2 = sld [smem:[#allocation0]]
  $region41: #{smoothing_layer.5} parent=0
    _
  %s4 = ssub.s32 1, %s2
  %s5 = scalar_select 0, %s4, %s2
  $region1: #{smoothing_layer.5} parent=0
    #allocation2 [shape = 'u8[2048]{0}', space=vmem, size = 0x800, scoped, tag = 'input window, operand 0']
    #allocation3 [shape = 's32[2]{0}', space=sflag, size = 0x8, scoped, tag = 'scoped memory for smoothing_layer.5']
    #allocation4 [shape = 's32[2]{0}', space=sflag, size = 0x8, scoped, tag = 'scoped memory for smoothing_layer.5']
    #allocation5 [shape = 'u8[2048]{0}', space=vmem, size = 0x800, scoped, tag = 'output window, operand 0']
    %6 = vsyncpa [#allocation3], 0
    %s7 = scalar_lea.sflag [#allocation3], 1
    %8 = vsyncpa %s7, 0
    %9 = vsyncpa [#allocation4], 0
    %s10 = scalar_lea.sflag [#allocation4], 1
    %11 = vsyncpa %s10, 0
    loop: start=0, step=1, limit=10
    $region2: #{smoothing_layer.5} parent=1 // loop_pre_header
      _
    $region3: #{smoothing_layer.5} parent=1 // loop_header
      %s13 = sphi 0, %s17
      %p14 = scmp.ge.s32.totalorder %s13, 10
      %s20 = sphi 0, %s32
      %s21 = sphi 0, %s28
      %s22 = sphi 0, %s20
      %s23 = sphi 0, %s21
      %s24 = sphi 0, %s22
      %s25 = sphi 0, %s23
      %s35 = sphi 0, %s37
      %s38 = sphi 0, %s35
      %s39 = sphi 0, %s38
      %s55 = sphi 0, %s39
      %s63 = sphi 0, %s65
      %s66 = sphi 0, %s63
      %s67 = sphi 0, %s66
      %s83 = sphi 0, %s67
    $region4: #{smoothing_layer.5} parent=1 // loop_header_branch
      %16 = sbr.rel (%p14) target = $region8
    $region5: #{smoothing_layer.5} parent=1 // loop_body
      %s18 = ssub.s32 %s13, 1
      %s19 = ssub.s32 %s13, 2
      %s26 = sadd.s32 1, %s21
      %p27 = scmp.ge.s32.totalorder %s26, 4
      %s28 = scalar_select %p27, 0, %s26
      %s29 = sadd.s32 1, %s20
      %s30 = scalar_select %p27, %s29, %s20
      %p31 = scmp.ge.s32.totalorder %s30, 2
      %s32 = scalar_select %p31, 0, %s30
      %s33 = ssub.s32 %s20, %s32
      %p34 = scmp.eq.s32.totalorder %s33, 0
      %s36 = sadd.s32 %s35, 1
      %s37 = scalar_select %p34, %s35, %s36
      %p40 = pneg %p34
      %p41 = scmp.eq.s32.totalorder %s13, 7
      %p42 = por %p40, %p41
      %p43 = scmp.ne.s32.totalorder %s35, %s38
      %p44 = scmp.eq.s32.totalorder %s13, 0
      %p45 = por %p43, %p44
      %p46 = scmp.ne.s32.totalorder %s35, %s38
      %p47 = scmp.eq.s32.totalorder %s18, 7
      %p48 = por %p46, %p47
      %p49 = scmp.ne.s32.totalorder %s38, %s39
      %p50 = scmp.eq.s32.totalorder %s18, 0
      %p51 = por %p49, %p50
      %p52 = scmp.ne.s32.totalorder %s38, %s39
      %p53 = scmp.eq.s32.totalorder %s19, 7
      %p54 = por %p52, %p53
      %p56 = scmp.ne.s32.totalorder %s39, %s55
      %p57 = scmp.eq.s32.totalorder %s19, 0
      %p58 = por %p56, %p57
      %s59 = ssub.s32 %s20, %s32
      %s60 = ssub.s32 %s21, %s28
      %s61 = sor.u32 %s59, %s60
      %p62 = scmp.eq.s32.totalorder %s61, 0
      %s64 = sadd.s32 %s63, 1
      %s65 = scalar_select %p62, %s63, %s64
      %p68 = pneg %p62
      %p69 = scmp.eq.s32.totalorder %s13, 7
      %p70 = por %p68, %p69
      %p71 = scmp.ne.s32.totalorder %s63, %s66
      %p72 = scmp.eq.s32.totalorder %s13, 0
      %p73 = por %p71, %p72
      %p74 = scmp.ne.s32.totalorder %s63, %s66
      %p75 = scmp.eq.s32.totalorder %s18, 7
      %p76 = por %p74, %p75
      %p77 = scmp.ne.s32.totalorder %s66, %s67
      %p78 = scmp.eq.s32.totalorder %s18, 0
      %p79 = por %p77, %p78
      %p80 = scmp.ne.s32.totalorder %s66, %s67
      %p81 = scmp.eq.s32.totalorder %s19, 7
      %p82 = por %p80, %p81
      %p84 = scmp.ne.s32.totalorder %s67, %s83
      %p85 = scmp.eq.s32.totalorder %s19, 0
      %p86 = por %p84, %p85
      %p87 = scmp.le.s32.totalorder 1, %s13
      %p88 = scmp.lt.s32.totalorder %s13, 9
      %p89 = pnand %p87, %p88
      %p90 = pneg %p89
      // Predicated region
      $region9: #{smoothing_layer.5} parent=5 // pred_check
        _
      $region10: #{smoothing_layer.5} parent=5 // pred_check_branch
        %92 = sbr.rel (%p89) target = $region12
      $region11: #{smoothing_layer.5} parent=5 // pred_region
        %s93 = ssub.s32 %s13, 1
      $region12: #{smoothing_layer.5} parent=5 // pred_fallthru
        _
      %p94 = scmp.lt.s32.totalorder %s13, 8
      // Predicated region
      $region13: #{smoothing_layer.5} parent=5 // pred_check
        %p95 = pneg %p94
      $region14: #{smoothing_layer.5} parent=5 // pred_check_branch
        %97 = sbr.rel (%p95) target = $region16
      $region15: #{smoothing_layer.5} parent=5 // pred_region
        // Predicated region
        $region17: #{smoothing_layer.5} parent=15 // pred_check
          %p98 = pneg %p45
        $region18: #{smoothing_layer.5} parent=15 // pred_check_branch
          %100 = sbr.rel (%p98) target = $region20
        $region19: #{smoothing_layer.5} parent=15 // pred_region
          %s101 = sand.u32 %s35, 1
          %s102 = scalar_lea.sflag [#allocation3], %s101
          %s103 = sand.u32 %s35, 1
          %s104 = smul.addr %s103, 2
          %s105 = scalar_lea.vmem [#allocation2], %s104
          %s107 = ssub.s32 32, 32
          %108 = vsyncadd %s102, %s107
          %s109 = smul.addr %s20, 2
          %s110 = smul.addr %s109, 16
          %s111 = scalar_lea.hbm %s0, %s110
          %s113 = sshll.u32 %s105, 4
          %s114 = int_to_ptr.vmem [resolvable:$true] %s113
          %116 = dma.hbm_to_vmem [thread:$0]  %s111, 32, %s114, %s102
        $region20: #{smoothing_layer.5} parent=15 // pred_fallthru
          _
      $region16: #{smoothing_layer.5} parent=5 // pred_fallthru
        _
      %p117 = scmp.le.s32.totalorder 1, %s13
      %p118 = scmp.lt.s32.totalorder %s13, 9
      %p119 = pnand %p117, %p118
      %p120 = pneg %p119
      // Predicated region
      $region21: #{smoothing_layer.5} parent=5 // pred_check
        _
      $region22: #{smoothing_layer.5} parent=5 // pred_check_branch
        %122 = sbr.rel (%p119) target = $region24
      $region23: #{smoothing_layer.5} parent=5 // pred_region
        %s123 = ssub.s32 %s13, 1
        %s124 = sand.u32 %s38, 1
        %s125 = scalar_lea.sflag [#allocation3], %s124
        %s126 = sand.u32 %s38, 1
        %s127 = smul.addr %s126, 2
        %s128 = scalar_lea.vmem [#allocation2], %s127
        // Predicated region
        $region25: #{smoothing_layer.5} parent=23 // pred_check
          %p129 = pneg %p51
        $region26: #{smoothing_layer.5} parent=23 // pred_check_branch
          %131 = sbr.rel (%p129) target = $region28
        $region27: #{smoothing_layer.5} parent=23 // pred_region
          %132 = dma.done %s125, 32
        $region28: #{smoothing_layer.5} parent=23 // pred_fallthru
          _
        %s133 = sand.u32 %s38, 1
        %s134 = scalar_lea.sflag [#allocation3], %s133
        %s135 = sand.u32 %s38, 1
        %s136 = smul.addr %s135, 2
        %s137 = scalar_lea.vmem [#allocation2], %s136
        %p138 = pneg %p51
        %p139 = pneg %p48
        %p140 = pneg %p79
        %p141 = pneg %p76
        %s142 = sand.u32 %s66, 1
        %s143 = scalar_lea.sflag [#allocation4], %s142
        %s144 = sand.u32 %s66, 1
        %s145 = smul.addr %s144, 2
        %s146 = scalar_lea.vmem [#allocation5], %s145
        %v147 = vld [vmem:[%s128] sm:$0x3]
        %v148 = vlaneseq
        %vm149 = vcmp.ge.s32.totalorder %v148, 0
        %vm150 = vcmp.lt.s32.totalorder %v148, 256
        %vm151 = vmand %vm149, %vm150
        %152 = vst.msk [vmem:[%s146] sm:$0x3] %vm151, %v147
        %s153 = sand.u32 %s66, 1
        %s154 = scalar_lea.sflag [#allocation4], %s153
        %s155 = sand.u32 %s66, 1
        %s156 = smul.addr %s155, 2
        %s157 = scalar_lea.vmem [#allocation5], %s156
        // Predicated region
        $region29: #{smoothing_layer.5} parent=23 // pred_check
          %p158 = pneg %p76
        $region30: #{smoothing_layer.5} parent=23 // pred_check_branch
          %160 = sbr.rel (%p158) target = $region32
        $region31: #{smoothing_layer.5} parent=23 // pred_region
          %s162 = ssub.s32 32, 32
          %163 = vsyncadd %s154, %s162
          %s164 = smul.addr %s23, 2
          %s165 = smul.addr %s22, 8
          %s166 = sadd.s32 %s164, %s165
          %s167 = smul.addr %s166, 16
          %s168 = scalar_lea.hbm %s1, %s167
          %s170 = sshll.u32 %s157, 4
          %s171 = int_to_ptr.vmem [resolvable:$true] %s170
          %173 = dma.vmem_to_hbm [thread:$0]  %s171, 32, %s168, %s154
        $region32: #{smoothing_layer.5} parent=23 // pred_fallthru
          _
      $region24: #{smoothing_layer.5} parent=5 // pred_fallthru
        _
      %p174 = scmp.le.s32.totalorder 2, %s13
      // Predicated region
      $region33: #{smoothing_layer.5} parent=5 // pred_check
        %p175 = pneg %p174
      $region34: #{smoothing_layer.5} parent=5 // pred_check_branch
        %177 = sbr.rel (%p175) target = $region36
      $region35: #{smoothing_layer.5} parent=5 // pred_region
        %s178 = ssub.s32 %s13, 2
        // Predicated region
        $region37: #{smoothing_layer.5} parent=35 // pred_check
          %p179 = pneg %p82
        $region38: #{smoothing_layer.5} parent=35 // pred_check_branch
          %181 = sbr.rel (%p179) target = $region40
        $region39: #{smoothing_layer.5} parent=35 // pred_region
          %s182 = sand.u32 %s67, 1
          %s183 = scalar_lea.sflag [#allocation4], %s182
          %s184 = sand.u32 %s67, 1
          %s185 = smul.addr %s184, 2
          %s186 = scalar_lea.vmem [#allocation5], %s185
          %187 = dma.done %s183, 32
        $region40: #{smoothing_layer.5} parent=35 // pred_fallthru
          _
      $region36: #{smoothing_layer.5} parent=5 // pred_fallthru
        _
    $region6: #{smoothing_layer.5} parent=1 // loop_footer
      %s17 = sadd.s32 1, %s13
    $region7: #{smoothing_layer.5} parent=1 // loop_footer_branch
      %12 = sbr.rel target = $region3
    $region8: #{smoothing_layer.5} parent=1 // loop_exit
      _
    %188 = vsyncpa [#allocation3], 1
    %s189 = scalar_lea.sflag [#allocation3], 1
    %190 = vsyncpa %s189, 1
    %191 = vsyncpa [#allocation4], 1
    %s192 = scalar_lea.sflag [#allocation4], 1
    %193 = vsyncpa %s192, 1

// kernel: smoothing_layer.4
$region0: #{smoothing_layer.4}
  #allocation0 [shape = 'u32[]', space=smem, size = 0x4, offset = 0x4, fixed_abs, tag = 'smem constant byte address 0x4 - core index']
  #allocation1 [shape = 'u32[144,128]{1,0:T(1,128)}', space=vmem, size = 0x12000, scoped, tag = 'internal scratch']
  %s0 = inlined_call_operand.hbm [shape: f32[2,20,20], index: 0, kind: input, shape index: {}]
  %s1 = inlined_call_operand.hbm [shape: f32[2,16,16], index: 1, kind: output, shape index: {}]
  %s2 = sld [smem:[#allocation0]]
  $region41: #{smoothing_layer.4} parent=0
    _
  %s4 = ssub.s32 1, %s2
  %s5 = scalar_select 0, %s4, %s2
  $region1: #{smoothing_layer.4} parent=0
    #allocation2 [shape = 'u8[24576]{0}', space=vmem, size = 0x6000, scoped, tag = 'input window, operand 0']
    #allocation3 [shape = 's32[2]{0}', space=sflag, size = 0x8, scoped, tag = 'scoped memory for smoothing_layer.4']
    #allocation4 [shape = 's32[2]{0}', space=sflag, size = 0x8, scoped, tag = 'scoped memory for smoothing_layer.4']
    #allocation5 [shape = 'u8[16384]{0}', space=vmem, size = 0x4000, scoped, tag = 'output window, operand 0']
    %6 = vsyncpa [#allocation3], 0
    %s7 = scalar_lea.sflag [#allocation3], 1
    %8 = vsyncpa %s7, 0
    %9 = vsyncpa [#allocation4], 0
    %s10 = scalar_lea.sflag [#allocation4], 1
    %11 = vsyncpa %s10, 0
    loop: start=0, step=1, limit=4
    $region2: #{smoothing_layer.4} parent=1 // loop_pre_header
      _
    $region3: #{smoothing_layer.4} parent=1 // loop_header
      %s13 = sphi 0, %s17
      %p14 = scmp.ge.s32.totalorder %s13, 4
      %s23 = sphi 0, %s25
      %s26 = sphi 0, %s23
      %s27 = sphi 0, %s26
      %s43 = sphi 0, %s27
      %s49 = sphi 0, %s51
      %s52 = sphi 0, %s49
      %s53 = sphi 0, %s52
      %s69 = sphi 0, %s53
    $region4: #{smoothing_layer.4} parent=1 // loop_header_branch
      %16 = sbr.rel (%p14) target = $region8
    $region5: #{smoothing_layer.4} parent=1 // loop_body
      %s18 = ssub.s32 %s13, 1
      %s19 = ssub.s32 %s13, 2
      %s20 = sadd.s32 %s13, 1
      %s21 = ssub.s32 %s13, %s20
      %p22 = scmp.eq.s32.totalorder %s21, 0
      %s24 = sadd.s32 %s23, 1
      %s25 = scalar_select %p22, %s23, %s24
      %p28 = pneg %p22
      %p29 = scmp.eq.s32.totalorder %s13, 1
      %p30 = por %p28, %p29
      %p31 = scmp.ne.s32.totalorder %s23, %s26
      %p32 = scmp.eq.s32.totalorder %s13, 0
      %p33 = por %p31, %p32
      %p34 = scmp.ne.s32.totalorder %s23, %s26
      %p35 = scmp.eq.s32.totalorder %s18, 1
      %p36 = por %p34, %p35
      %p37 = scmp.ne.s32.totalorder %s26, %s27
      %p38 = scmp.eq.s32.totalorder %s18, 0
      %p39 = por %p37, %p38
      %p40 = scmp.ne.s32.totalorder %s26, %s27
      %p41 = scmp.eq.s32.totalorder %s19, 1
      %p42 = por %p40, %p41
      %p44 = scmp.ne.s32.totalorder %s27, %s43
      %p45 = scmp.eq.s32.totalorder %s19, 0
      %p46 = por %p44, %p45
      %s47 = ssub.s32 %s13, %s20
      %p48 = scmp.eq.s32.totalorder %s47, 0
      %s50 = sadd.s32 %s49, 1
      %s51 = scalar_select %p48, %s49, %s50
      %p54 = pneg %p48
      %p55 = scmp.eq.s32.totalorder %s13, 1
      %p56 = por %p54, %p55
      %p57 = scmp.ne.s32.totalorder %s49, %s52
      %p58 = scmp.eq.s32.totalorder %s13, 0
      %p59 = por %p57, %p58
      %p60 = scmp.ne.s32.totalorder %s49, %s52
      %p61 = scmp.eq.s32.totalorder %s18, 1
      %p62 = por %p60, %p61
      %p63 = scmp.ne.s32.totalorder %s52, %s53
      %p64 = scmp.eq.s32.totalorder %s18, 0
      %p65 = por %p63, %p64
      %p66 = scmp.ne.s32.totalorder %s52, %s53
      %p67 = scmp.eq.s32.totalorder %s19, 1
      %p68 = por %p66, %p67
      %p70 = scmp.ne.s32.totalorder %s53, %s69
      %p71 = scmp.eq.s32.totalorder %s19, 0
      %p72 = por %p70, %p71
      %p73 = scmp.le.s32.totalorder 1, %s13
      %p74 = scmp.lt.s32.totalorder %s13, 3
      %p75 = pnand %p73, %p74
      %p76 = pneg %p75
      // Predicated region
      $region9: #{smoothing_layer.4} parent=5 // pred_check
        _
      $region10: #{smoothing_layer.4} parent=5 // pred_check_branch
        %78 = sbr.rel (%p75) target = $region12
      $region11: #{smoothing_layer.4} parent=5 // pred_region
        %s79 = ssub.s32 %s13, 1
      $region12: #{smoothing_layer.4} parent=5 // pred_fallthru
        _
      %p80 = scmp.lt.s32.totalorder %s13, 2
      // Predicated region
      $region13: #{smoothing_layer.4} parent=5 // pred_check
        %p81 = pneg %p80
      $region14: #{smoothing_layer.4} parent=5 // pred_check_branch
        %83 = sbr.rel (%p81) target = $region16
      $region15: #{smoothing_layer.4} parent=5 // pred_region
        // Predicated region
        $region17: #{smoothing_layer.4} parent=15 // pred_check
          %p84 = pneg %p33
        $region18: #{smoothing_layer.4} parent=15 // pred_check_branch
          %86 = sbr.rel (%p84) target = $region20
        $region19: #{smoothing_layer.4} parent=15 // pred_region
          %s87 = sand.u32 %s23, 1
          %s88 = scalar_lea.sflag [#allocation3], %s87
          %s89 = sand.u32 %s23, 1
          %s90 = smul.addr %s89, 24
          %s91 = scalar_lea.vmem [#allocation2], %s90
          %s93 = ssub.s32 384, 384
          %94 = vsyncadd %s88, %s93
          %s95 = smul.addr %s13, 3
          %s96 = smul.addr %s95, 128
          %s97 = scalar_lea.hbm %s0, %s96
          %s98 = sshll.u32 %s91, 4
          %s99 = int_to_ptr.vmem [resolvable:$true] %s98
          %104 = dma.hbm_to_vmem [thread:$0]  %s97, 384, %s99, %s88, 128, 128, 8
        $region20: #{smoothing_layer.4} parent=15 // pred_fallthru
          _
      $region16: #{smoothing_layer.4} parent=5 // pred_fallthru
        _
      %p105 = scmp.le.s32.totalorder 1, %s13
      %p106 = scmp.lt.s32.totalorder %s13, 3
      %p107 = pnand %p105, %p106
      %p108 = pneg %p107
      // Predicated region
      $region21: #{smoothing_layer.4} parent=5 // pred_check
        _
      $region22: #{smoothing_layer.4} parent=5 // pred_check_branch
        %110 = sbr.rel (%p107) target = $region24
      $region23: #{smoothing_layer.4} parent=5 // pred_region
        %s111 = ssub.s32 %s13, 1
        %s112 = sand.u32 %s26, 1
        %s113 = scalar_lea.sflag [#allocation3], %s112
        %s114 = sand.u32 %s26, 1
        %s115 = smul.addr %s114, 24
        %s116 = scalar_lea.vmem [#allocation2], %s115
        // Predicated region
        $region25: #{smoothing_layer.4} parent=23 // pred_check
          %p117 = pneg %p39
        $region26: #{smoothing_layer.4} parent=23 // pred_check_branch
          %119 = sbr.rel (%p117) target = $region28
        $region27: #{smoothing_layer.4} parent=23 // pred_region
          %120 = dma.done %s113, 384
        $region28: #{smoothing_layer.4} parent=23 // pred_fallthru
          _
        %s121 = sand.u32 %s26, 1
        %s122 = scalar_lea.sflag [#allocation3], %s121
        %s123 = sand.u32 %s26, 1
        %s124 = smul.addr %s123, 24
        %s125 = scalar_lea.vmem [#allocation2], %s124
        %p126 = pneg %p39
        %p127 = pneg %p36
        %p128 = pneg %p65
        %p129 = pneg %p62
        %s130 = sand.u32 %s52, 1
        %s131 = scalar_lea.sflag [#allocation4], %s130
        %s132 = sand.u32 %s52, 1
        %s133 = smul.addr %s132, 16
        %s134 = scalar_lea.vmem [#allocation5], %s133
        %v135 = vld [vmem:[%s116] sm:$0xff]
        %v136 = vld [vmem:[%s116 + $0x8] sm:$0xff]
        %v137 = vld [vmem:[%s116 + $0x10] sm:$0xf]
        %v138 = vmul.f32 %v135, 6.962478e-08
        %v139 = vmul.f32 %v136, 6.962478e-08
        %v140 = vmul.f32 %v135, 2.8088642e-05
        %v141 = vmul.f32 %v136, 2.8088642e-05
        %144 = vrot.lane.b32.xlu0 %v140, 127
        %v145 = vpop.permute.xlu0 %144
        %146 = vrot.lane.b32.xlu0 %v141, 127
        %v147 = vpop.permute.xlu0 %146
        %v150 = vadd.f32 %v138, %v145
        %v151 = vadd.f32 %v139, %v147
        %v152 = vmul.f32 %v135, 0.00020754855
        %v153 = vmul.f32 %v136, 0.00020754855
        %156 = vrot.lane.b32.xlu0 %v152, 126
        %v157 = vpop.permute.xlu0 %156
        %158 = vrot.lane.b32.xlu0 %v153, 126
        %v159 = vpop.permute.xlu0 %158
        %v162 = vadd.f32 %v150, %v157
        %v163 = vadd.f32 %v151, %v159
        %164 = vrot.lane.b32.xlu0 %v140, 125
        %v165 = vpop.permute.xlu0 %164
        %166 = vrot.lane.b32.xlu0 %v141, 125
        %v167 = vpop.permute.xlu0 %166
        %v170 = vadd.f32 %v162, %v165
        %v171 = vadd.f32 %v163, %v167
        %174 = vrot.lane.b32.xlu0 %v138, 124
        %v175 = vpop.permute.xlu0 %174
        %176 = vrot.lane.b32.xlu0 %v139, 124
        %v177 = vpop.permute.xlu0 %176
        %v180 = vadd.f32 %v170, %v175
        %v181 = vadd.f32 %v171, %v177
        %v182 = vmul.f32 %v137, 2.8088642e-05
        %vm184 = vcmask 1046528
        %v185 = vrot.slane %v140, 1
        %v186 = vrot.slane %v141, 1
        %v187 = vsel %vm184, %v185, %v186
        %v188 = vrot.slane %v182, 1
        %v189 = vsel %vm184, %v186, %v188
        %v192 = vadd.f32 %v180, %v187
        %v193 = vadd.f32 %v181, %v189
        %v194 = vmul.f32 %v135, 0.011331767
        %v195 = vmul.f32 %v136, 0.011331767
        %v196 = vmul.f32 %v137, 0.011331767
        %v200 = vrot.slane %v194, 1
        %v201 = vrot.slane %v195, 1
        %v202 = vsel %vm184, %v200, %v201
        %v203 = vrot.slane %v196, 1
        %v204 = vsel %vm184, %v201, %v203
        %205 = vrot.lane.b32.xlu0 %v202, 127
        %v206 = vpop.permute.xlu0 %205
        %207 = vrot.lane.b32.xlu0 %v204, 127
        %v208 = vpop.permute.xlu0 %207
        %v211 = vadd.f32 %v192, %v206
        %v212 = vadd.f32 %v193, %v208
        %v213 = vmul.f32 %v135, 0.08373106
        %v214 = vmul.f32 %v136, 0.08373106
        %v215 = vmul.f32 %v137, 0.08373106
        %v219 = vrot.slane %v213, 1
        %v220 = vrot.slane %v214, 1
        %v221 = vsel %vm184, %v219, %v220
        %v222 = vrot.slane %v215, 1
        %v223 = vsel %vm184, %v220, %v222
        %224 = vrot.lane.b32.xlu0 %v221, 126
        %v225 = vpop.permute.xlu0 %224
        %226 = vrot.lane.b32.xlu0 %v223, 126
        %v227 = vpop.permute.xlu0 %226
        %v230 = vadd.f32 %v211, %v225
        %v231 = vadd.f32 %v212, %v227
        %232 = vrot.lane.b32.xlu0 %v202, 125
        %v233 = vpop.permute.xlu0 %232
        %234 = vrot.lane.b32.xlu0 %v204, 125
        %v235 = vpop.permute.xlu0 %234
        %v238 = vadd.f32 %v230, %v233
        %v239 = vadd.f32 %v231, %v235
        %240 = vrot.lane.b32.xlu0 %v187, 124
        %v241 = vpop.permute.xlu0 %240
        %242 = vrot.lane.b32.xlu0 %v189, 124
        %v243 = vpop.permute.xlu0 %242
        %v246 = vadd.f32 %v238, %v241
        %v247 = vadd.f32 %v239, %v243
        %v248 = vmul.f32 %v137, 0.00020754855
        %vm250 = vcmask 1045504
        %v251 = vrot.slane %v152, 2
        %v252 = vrot.slane %v153, 2
        %v253 = vsel %vm250, %v251, %v252
        %v254 = vrot.slane %v248, 2
        %v255 = vsel %vm250, %v252, %v254
        %v258 = vadd.f32 %v246, %v253
        %v259 = vadd.f32 %v247, %v255
        %v260 = vrot.slane %v213, 2
        %v261 = vrot.slane %v214, 2
        %v262 = vsel %vm250, %v260, %v261
        %v263 = vrot.slane %v215, 2
        %v264 = vsel %vm250, %v261, %v263
        %265 = vrot.lane.b32.xlu0 %v262, 127
        %v266 = vpop.permute.xlu0 %265
        %267 = vrot.lane.b32.xlu0 %v264, 127
        %v268 = vpop.permute.xlu0 %267
        %v271 = vadd.f32 %v258, %v266
        %v272 = vadd.f32 %v259, %v268
        %v273 = vmul.f32 %v135, 0.61869353
        %v274 = vmul.f32 %v136, 0.61869353
        %v275 = vmul.f32 %v137, 0.61869353
        %v279 = vrot.slane %v273, 2
        %v280 = vrot.slane %v274, 2
        %v281 = vsel %vm250, %v279, %v280
        %v282 = vrot.slane %v275, 2
        %v283 = vsel %vm250, %v280, %v282
        %284 = vrot.lane.b32.xlu0 %v281, 126
        %v285 = vpop.permute.xlu0 %284
        %286 = vrot.lane.b32.xlu0 %v283, 126
        %v287 = vpop.permute.xlu0 %286
        %v290 = vadd.f32 %v271, %v285
        %v291 = vadd.f32 %v272, %v287
        %292 = vrot.lane.b32.xlu0 %v262, 125
        %v293 = vpop.permute.xlu0 %292
        %294 = vrot.lane.b32.xlu0 %v264, 125
        %v295 = vpop.permute.xlu0 %294
        %v298 = vadd.f32 %v290, %v293
        %v299 = vadd.f32 %v291, %v295
        %300 = vrot.lane.b32.xlu0 %v253, 124
        %v301 = vpop.permute.xlu0 %300
        %302 = vrot.lane.b32.xlu0 %v255, 124
        %v303 = vpop.permute.xlu0 %302
        %v306 = vadd.f32 %v298, %v301
        %v307 = vadd.f32 %v299, %v303
        %vm308 = vcmask 1044480
        %v309 = vrot.slane %v140, 3
        %v310 = vrot.slane %v141, 3
        %v311 = vsel %vm308, %v309, %v310
        %v312 = vrot.slane %v182, 3
        %v313 = vsel %vm308, %v310, %v312
        %v316 = vadd.f32 %v306, %v311
        %v317 = vadd.f32 %v307, %v313
        %v318 = vrot.slane %v194, 3
        %v319 = vrot.slane %v195, 3
        %v320 = vsel %vm308, %v318, %v319
        %v321 = vrot.slane %v196, 3
        %v322 = vsel %vm308, %v319, %v321
        %323 = vrot.lane.b32.xlu0 %v320, 127
        %v324 = vpop.permute.xlu0 %323
        %325 = vrot.lane.b32.xlu0 %v322, 127
        %v326 = vpop.permute.xlu0 %325
        %v329 = vadd.f32 %v316, %v324
        %v330 = vadd.f32 %v317, %v326
        %v331 = vrot.slane %v213, 3
        %v332 = vrot.slane %v214, 3
        %v333 = vsel %vm308, %v331, %v332
        %v334 = vrot.slane %v215, 3
        %v335 = vsel %vm308, %v332, %v334
        %336 = vrot.lane.b32.xlu0 %v333, 126
        %v337 = vpop.permute.xlu0 %336
        %338 = vrot.lane.b32.xlu0 %v335, 126
        %v339 = vpop.permute.xlu0 %338
        %v342 = vadd.f32 %v329, %v337
        %v343 = vadd.f32 %v330, %v339
        %344 = vrot.lane.b32.xlu0 %v320, 125
        %v345 = vpop.permute.xlu0 %344
        %346 = vrot.lane.b32.xlu0 %v322, 125
        %v347 = vpop.permute.xlu0 %346
        %v350 = vadd.f32 %v342, %v345
        %v351 = vadd.f32 %v343, %v347
        %352 = vrot.lane.b32.xlu0 %v311, 124
        %v353 = vpop.permute.xlu0 %352
        %354 = vrot.lane.b32.xlu0 %v313, 124
        %v355 = vpop.permute.xlu0 %354
        %v358 = vadd.f32 %v350, %v353
        %v359 = vadd.f32 %v351, %v355
        %v360 = vmul.f32 %v137, 6.962478e-08
        %vm362 = vcmask 1043456
        %v363 = vrot.slane %v138, 4
        %v364 = vrot.slane %v139, 4
        %v365 = vsel %vm362, %v363, %v364
        %v366 = vrot.slane %v360, 4
        %v367 = vsel %vm362, %v364, %v366
        %v370 = vadd.f32 %v358, %v365
        %v371 = vadd.f32 %v359, %v367
        %v372 = vrot.slane %v140, 4
        %v373 = vrot.slane %v141, 4
        %v374 = vsel %vm362, %v372, %v373
        %v375 = vrot.slane %v182, 4
        %v376 = vsel %vm362, %v373, %v375
        %377 = vrot.lane.b32.xlu0 %v374, 127
        %v378 = vpop.permute.xlu0 %377
        %379 = vrot.lane.b32.xlu0 %v376, 127
        %v380 = vpop.permute.xlu0 %379
        %v383 = vadd.f32 %v370, %v378
        %v384 = vadd.f32 %v371, %v380
        %v385 = vrot.slane %v152, 4
        %v386 = vrot.slane %v153, 4
        %v387 = vsel %vm362, %v385, %v386
        %v388 = vrot.slane %v248, 4
        %v389 = vsel %vm362, %v386, %v388
        %390 = vrot.lane.b32.xlu0 %v387, 126
        %v391 = vpop.permute.xlu0 %390
        %392 = vrot.lane.b32.xlu0 %v389, 126
        %v393 = vpop.permute.xlu0 %392
        %v396 = vadd.f32 %v383, %v391
        %v397 = vadd.f32 %v384, %v393
        %398 = vrot.lane.b32.xlu0 %v374, 125
        %v399 = vpop.permute.xlu0 %398
        %400 = vrot.lane.b32.xlu0 %v376, 125
        %v401 = vpop.permute.xlu0 %400
        %v404 = vadd.f32 %v396, %v399
        %v405 = vadd.f32 %v397, %v401
        %406 = vrot.lane.b32.xlu0 %v365, 124
        %v407 = vpop.permute.xlu0 %406
        %408 = vrot.lane.b32.xlu0 %v367, 124
        %v409 = vpop.permute.xlu0 %408
        %v412 = vadd.f32 %v404, %v407
        %v413 = vadd.f32 %v405, %v409
        %vm414 = vcmask 130048
        %415 = vst.msk [vmem:[%s134] sm:$0xff] %vm414, %v412
        %416 = vst.msk [vmem:[%s134 + $0x8] sm:$0xff] %vm414, %v413
        %s417 = sand.u32 %s52, 1
        %s418 = scalar_lea.sflag [#allocation4], %s417
        %s419 = sand.u32 %s52, 1
        %s420 = smul.addr %s419, 16
        %s421 = scalar_lea.vmem [#allocation5], %s420
        // Predicated region
        $region29: #{smoothing_layer.4} parent=23 // pred_check
          %p422 = pneg %p62
        $region30: #{smoothing_layer.4} parent=23 // pred_check_branch
          %424 = sbr.rel (%p422) target = $region32
        $region31: #{smoothing_layer.4} parent=23 // pred_region
          %s426 = ssub.s32 256, 256
          %427 = vsyncadd %s418, %s426
          %s428 = smul.addr %s18, 2
          %s429 = smul.addr %s428, 128
          %s430 = scalar_lea.hbm %s1, %s429
          %s431 = sshll.u32 %s421, 4
          %s432 = int_to_ptr.vmem [resolvable:$true] %s431
          %437 = dma.vmem_to_hbm [thread:$0]  %s432, 256, %s430, %s418, 128, 128, 8
        $region32: #{smoothing_layer.4} parent=23 // pred_fallthru
          _
      $region24: #{smoothing_layer.4} parent=5 // pred_fallthru
        _
      %p438 = scmp.le.s32.totalorder 2, %s13
      // Predicated region
      $region33: #{smoothing_layer.4} parent=5 // pred_check
        %p439 = pneg %p438
      $region34: #{smoothing_layer.4} parent=5 // pred_check_branch
        %441 = sbr.rel (%p439) target = $region36
      $region35: #{smoothing_layer.4} parent=5 // pred_region
        %s442 = ssub.s32 %s13, 2
        // Predicated region
        $region37: #{smoothing_layer.4} parent=35 // pred_check
          %p443 = pneg %p68
        $region38: #{smoothing_layer.4} parent=35 // pred_check_branch
          %445 = sbr.rel (%p443) target = $region40
        $region39: #{smoothing_layer.4} parent=35 // pred_region
          %s446 = sand.u32 %s53, 1
          %s447 = scalar_lea.sflag [#allocation4], %s446
          %s448 = sand.u32 %s53, 1
          %s449 = smul.addr %s448, 16
          %s450 = scalar_lea.vmem [#allocation5], %s449
          %451 = dma.done %s447, 256
        $region40: #{smoothing_layer.4} parent=35 // pred_fallthru
          _
      $region36: #{smoothing_layer.4} parent=5 // pred_fallthru
        _
    $region6: #{smoothing_layer.4} parent=1 // loop_footer
      %s17 = sadd.s32 1, %s13
    $region7: #{smoothing_layer.4} parent=1 // loop_footer_branch
      %12 = sbr.rel target = $region3
    $region8: #{smoothing_layer.4} parent=1 // loop_exit
      _
    %452 = vsyncpa [#allocation3], 1
    %s453 = scalar_lea.sflag [#allocation3], 1
    %454 = vsyncpa %s453, 1
    %455 = vsyncpa [#allocation4], 1
    %s456 = scalar_lea.sflag [#allocation4], 1
    %457 = vsyncpa %s456, 1

</llo_original>
